<compile_context>
chip_gen: v5e
topology: v5e:2x2
jax: 0.10.0
libtpu: 0.0.40
codegen_flags: <defaults>
</compile_context>

<pallas_src>
import jax
import jax.numpy as jnp
from jax.experimental import pallas as pl
from jax.experimental.pallas import tpu as pltpu


def _conv1x1_gelu_kernel(w_ref, x_ref, o_ref):
    # w_ref: (C_out, C_in) resident weight tile.
    # x_ref: (C_in, H*W)  -- channels on sublanes, pixels on lanes (lane-dense).
    # o_ref: (C_out, H*W) -- lane-dense output, unmasked stores.
    v1 = jnp.dot(w_ref[...], x_ref[...], preferred_element_type=jnp.float32)
    v2 = v1 * 0.5
    v3 = v1 * 0.7071067811865476
    v4 = jax.lax.erf(v3)
    v5 = v4 + 1.0
    o_ref[...] = (v2 * v5).astype(o_ref.dtype)


def conv1x1_gelu(x_nchw, weight_oi11):
    """x_nchw: (N, C_in, H, W) float32; weight_oi11: (C_out, C_in, 1, 1)."""
    n, c_in, h, w = x_nchw.shape
    c_out = weight_oi11.shape[0]
    hw = h * w

    # Free reshapes on contiguous NCHW data -- no transposes, no copies.
    x_flat = x_nchw.reshape(n, c_in, hw)        # (N, C_in, H*W)
    w_mat = weight_oi11[:, :, 0, 0]             # (C_out, C_in)

    out_flat = pl.pallas_call(
        _conv1x1_gelu_kernel,
        out_shape=jax.ShapeDtypeStruct((n, c_out, hw), x_nchw.dtype),
        grid_spec=pltpu.PrefetchScalarGridSpec(
            num_scalar_prefetch=0,
            grid=(n,),  # one image per grid step; >=2 steps feeds both v7x TCs
            in_specs=[
                # Weight: whole (C_out, C_in) block, same block every step (resident).
                pl.BlockSpec((c_out, c_in), lambda b: (0, 0)),
                # Activations: (C_in, H*W) slab of image b; last two dims equal
                # the full array dims, so no (8,128) divisibility constraint.
                pl.BlockSpec((None, c_in, hw), lambda b: (b, 0, 0)),
            ],
            out_specs=pl.BlockSpec((None, c_out, hw), lambda b: (b, 0, 0)),
        ),
        compiler_params=pltpu.CompilerParams(
            dimension_semantics=("parallel",),
        ),
    )(w_mat, x_flat)

    # Free reshape back to NCHW.
    return out_flat.reshape(n, c_out, h, w)


if __name__ == "__main__":
    # Small shapes consistent with the module: 1x1 conv with 37 in / 37 out channels.
    # (The original script's x1 had 68 channels, which is inconsistent with the
    #  37-in-channel weight; we use a consistent 37-channel input.)
    key = jax.random.PRNGKey(0)
    kx, kw = jax.random.split(key)
    N, C_IN, H, W = 2, 37, 16, 16
    C_OUT = 37

    x = jax.random.normal(kx, (N, C_IN, H, W), dtype=jnp.float32)
    weight = jax.random.normal(kw, (C_OUT, C_IN, 1, 1), dtype=jnp.float32)

    out = conv1x1_gelu(x, weight)
    jax.block_until_ready(out)

    # Reference check in plain JAX (exact erf-GELU applied to the 1x1 conv).
    v1 = jnp.einsum("nchw,oc->nohw", x, weight[:, :, 0, 0])
    ref = (v1 * 0.5) * (jax.lax.erf(v1 * 0.7071067811865476) + 1.0)
    assert jnp.allclose(out, ref, atol=1e-4, rtol=1e-4)

    print("KERNEL_OK")
</pallas_src>

<mosaic_0001>
module attributes {stable_mosaic.version = 11 : i64} {
  func.func @_conv1x1_gelu_kernel(%arg0: i32, %arg1: memref<37x37xf32, #tpu.memory_space<vmem>>, %arg2: memref<1x37x256xf32, #tpu.memory_space<vmem>>, %arg3: memref<1x37x256xf32, #tpu.memory_space<vmem>>) attributes {dimension_semantics = [#tpu.dimension_semantics<parallel>], iteration_bounds = array<i64: 2>, scalar_prefetch = 0 : i64, scratch_operands = 0 : i64, tpu.core_type = #tpu.core_type<tc>, window_params = [{pipeline_mode = #tpu.pipeline_mode<synchronous>, transform_indices = @transform_0, window_bounds = array<i64: 37, 37>}, {transform_indices = @transform_1, window_bounds = array<i64: 1, 37, 256>}, {transform_indices = @transform_2, window_bounds = array<i64: 1, 37, 256>}]} {
    %c0 = arith.constant 0 : index
    %c0_0 = arith.constant 0 : index
    %0 = vector.load %arg1[%c0, %c0_0] : memref<37x37xf32, #tpu.memory_space<vmem>>, vector<37x37xf32>
    %c0_1 = arith.constant 0 : index
    %c0_2 = arith.constant 0 : index
    %c0_3 = arith.constant 0 : index
    %1 = vector.load %arg2[%c0_1, %c0_2, %c0_3] : memref<1x37x256xf32, #tpu.memory_space<vmem>>, vector<1x37x256xf32>
    %2 = vector.shape_cast %1 : vector<1x37x256xf32> to vector<37x256xf32>
    %cst = arith.constant dense<0.000000e+00> : vector<37x256xf32>
    %3 = tpu.matmul %0, %2, %cst {dimension_numbers = #tpu.dot_dimension_numbers<[1], [0], [0], [1], [0, 0, 1, 1], [], []>} : vector<37x37xf32>, vector<37x256xf32>, vector<37x256xf32> -> vector<37x256xf32>
    %cst_4 = arith.constant 5.000000e-01 : f32
    %4 = vector.broadcast %cst_4 : f32 to vector<37x256xf32>
    %5 = arith.mulf %3, %4 : vector<37x256xf32>
    %cst_5 = arith.constant 0.707106769 : f32
    %6 = vector.broadcast %cst_5 : f32 to vector<37x256xf32>
    %7 = arith.mulf %3, %6 : vector<37x256xf32>
    %8 = math.erf %7 : vector<37x256xf32>
    %cst_6 = arith.constant 1.000000e+00 : f32
    %9 = vector.broadcast %cst_6 : f32 to vector<37x256xf32>
    %10 = arith.addf %8, %9 : vector<37x256xf32>
    %11 = arith.mulf %5, %10 : vector<37x256xf32>
    %c0_7 = arith.constant 0 : index
    %c0_8 = arith.constant 0 : index
    %c0_9 = arith.constant 0 : index
    %12 = vector.load %arg3[%c0_7, %c0_8, %c0_9] : memref<1x37x256xf32, #tpu.memory_space<vmem>>, vector<1x37x256xf32>
    %13 = vector.shape_cast %12 : vector<1x37x256xf32> to vector<37x256xf32>
    %14 = vector.shape_cast %11 : vector<37x256xf32> to vector<1x37x256xf32>
    tpu.vector_store %arg3[%c0_7, %c0_8, %c0_9], %14 {strides = array<i32>} : memref<1x37x256xf32, #tpu.memory_space<vmem>>, vector<1x37x256xf32>,
    return
  }
  func.func @transform_0(%arg0: i32) -> (i32, i32) {
    %c0_i32 = arith.constant 0 : i32
    %c0_i32_0 = arith.constant 0 : i32
    %c0_i32_1 = arith.constant 0 : i32
    return %c0_i32, %c0_i32_0 : i32, i32
  }
  func.func @transform_1(%arg0: i32) -> (i32, i32, i32) {
    %c0_i32 = arith.constant 0 : i32
    %c0_i32_0 = arith.constant 0 : i32
    %c0_i32_1 = arith.constant 0 : i32
    return %arg0, %c0_i32, %c0_i32_0 : i32, i32, i32
  }
  func.func @transform_2(%arg0: i32) -> (i32, i32, i32) {
    %c0_i32 = arith.constant 0 : i32
    %c0_i32_0 = arith.constant 0 : i32
    %c0_i32_1 = arith.constant 0 : i32
    return %arg0, %c0_i32, %c0_i32_0 : i32, i32, i32
  }
}

</mosaic_0001>

<llo_original>
// kernel: tpu_custom_call.1
$region0: #{tpu_custom_call.1}
  #allocation0 [shape = 'u32[]', space=smem, size = 0x4, offset = 0x4, fixed_abs, tag = 'smem constant byte address 0x4 - core index']
  #allocation1 [shape = 'u32[72,128]{1,0:T(1,128)}', space=vmem, size = 0x9000, scoped, tag = 'internal scratch']
  %s0 = inlined_call_operand.vmem [shape: f32[37,37], index: 0, kind: input, shape index: {}]
  %s1 = inlined_call_operand.vmem [shape: f32[2,37,256], index: 1, kind: input, shape index: {}]
  %s2 = inlined_call_operand.vmem [shape: f32[2,37,256], index: 2, kind: output, shape index: {}]
  %s3 = sld [smem:[#allocation0]]
  $region41: #{tpu_custom_call.1} parent=0
    _
  %s5 = ssub.s32 1, %s3
  %s6 = scalar_select 0, %s5, %s3
  loop: start=0, step=1, limit=4
  $region2: #{tpu_custom_call.1} parent=0 // loop_pre_header
    _
  $region3: #{tpu_custom_call.1} parent=0 // loop_header
    %s8 = sphi 0, %s12
    %p9 = scmp.ge.s32.totalorder %s8, 4
    %s16 = sphi 0, %s16
    %s18 = sphi 0, %s16
    %s19 = sphi 0, %s18
    %s33 = sphi 0, %s19
    %s39 = sphi 0, %s41
    %s42 = sphi 0, %s39
    %s43 = sphi 0, %s42
    %s59 = sphi 0, %s43
    %s65 = sphi 0, %s67
    %s68 = sphi 0, %s65
    %s69 = sphi 0, %s68
    %s85 = sphi 0, %s69
  $region4: #{tpu_custom_call.1} parent=0 // loop_header_branch
    %11 = sbr.rel (%p9) target = $region8
  $region5: #{tpu_custom_call.1} parent=0 // loop_body
    %s13 = ssub.s32 %s8, 1
    %s14 = ssub.s32 %s8, 2
    %s15 = sadd.s32 %s8, 1
    %s17 = sadd.s32 %s16, 1
    %p20 = scmp.eq.s32.totalorder %s8, 1
    %p21 = scmp.ne.s32.totalorder %s16, %s18
    %p22 = scmp.eq.s32.totalorder %s8, 0
    %p23 = por %p21, %p22
    %p24 = scmp.ne.s32.totalorder %s16, %s18
    %p25 = scmp.eq.s32.totalorder %s13, 1
    %p26 = por %p24, %p25
    %p27 = scmp.ne.s32.totalorder %s18, %s19
    %p28 = scmp.eq.s32.totalorder %s13, 0
    %p29 = por %p27, %p28
    %p30 = scmp.ne.s32.totalorder %s18, %s19
    %p31 = scmp.eq.s32.totalorder %s14, 1
    %p32 = por %p30, %p31
    %p34 = scmp.ne.s32.totalorder %s19, %s33
    %p35 = scmp.eq.s32.totalorder %s14, 0
    %p36 = por %p34, %p35
    %s37 = ssub.s32 %s8, %s15
    %p38 = scmp.eq.s32.totalorder %s37, 0
    %s40 = sadd.s32 %s39, 1
    %s41 = scalar_select %p38, %s39, %s40
    %p44 = pneg %p38
    %p45 = scmp.eq.s32.totalorder %s8, 1
    %p46 = por %p44, %p45
    %p47 = scmp.ne.s32.totalorder %s39, %s42
    %p48 = scmp.eq.s32.totalorder %s8, 0
    %p49 = por %p47, %p48
    %p50 = scmp.ne.s32.totalorder %s39, %s42
    %p51 = scmp.eq.s32.totalorder %s13, 1
    %p52 = por %p50, %p51
    %p53 = scmp.ne.s32.totalorder %s42, %s43
    %p54 = scmp.eq.s32.totalorder %s13, 0
    %p55 = por %p53, %p54
    %p56 = scmp.ne.s32.totalorder %s42, %s43
    %p57 = scmp.eq.s32.totalorder %s14, 1
    %p58 = por %p56, %p57
    %p60 = scmp.ne.s32.totalorder %s43, %s59
    %p61 = scmp.eq.s32.totalorder %s14, 0
    %p62 = por %p60, %p61
    %s63 = ssub.s32 %s8, %s15
    %p64 = scmp.eq.s32.totalorder %s63, 0
    %s66 = sadd.s32 %s65, 1
    %s67 = scalar_select %p64, %s65, %s66
    %p70 = pneg %p64
    %p71 = scmp.eq.s32.totalorder %s8, 1
    %p72 = por %p70, %p71
    %p73 = scmp.ne.s32.totalorder %s65, %s68
    %p74 = scmp.eq.s32.totalorder %s8, 0
    %p75 = por %p73, %p74
    %p76 = scmp.ne.s32.totalorder %s65, %s68
    %p77 = scmp.eq.s32.totalorder %s13, 1
    %p78 = por %p76, %p77
    %p79 = scmp.ne.s32.totalorder %s68, %s69
    %p80 = scmp.eq.s32.totalorder %s13, 0
    %p81 = por %p79, %p80
    %p82 = scmp.ne.s32.totalorder %s68, %s69
    %p83 = scmp.eq.s32.totalorder %s14, 1
    %p84 = por %p82, %p83
    %p86 = scmp.ne.s32.totalorder %s69, %s85
    %p87 = scmp.eq.s32.totalorder %s14, 0
    %p88 = por %p86, %p87
    %p89 = scmp.le.s32.totalorder 1, %s8
    %p90 = scmp.lt.s32.totalorder %s8, 3
    %p91 = pnand %p89, %p90
    %p92 = pneg %p91
    // Predicated region
    $region9: #{tpu_custom_call.1} parent=5 // pred_check
      _
    $region10: #{tpu_custom_call.1} parent=5 // pred_check_branch
      %94 = sbr.rel (%p91) target = $region12
    $region11: #{tpu_custom_call.1} parent=5 // pred_region
      %s95 = ssub.s32 %s8, 1
      // Predicated region
      $region13: #{tpu_custom_call.1} parent=11 // pred_check
        %p96 = pneg %p29
      $region14: #{tpu_custom_call.1} parent=11 // pred_check_branch
        %98 = sbr.rel (%p96) target = $region16
      $region15: #{tpu_custom_call.1} parent=11 // pred_region
        _
      $region16: #{tpu_custom_call.1} parent=11 // pred_fallthru
        _
    $region12: #{tpu_custom_call.1} parent=5 // pred_fallthru
      _
    %p99 = scmp.lt.s32.totalorder %s8, 2
    // Predicated region
    $region17: #{tpu_custom_call.1} parent=5 // pred_check
      %p100 = pneg %p99
    $region18: #{tpu_custom_call.1} parent=5 // pred_check_branch
      %102 = sbr.rel (%p100) target = $region20
    $region19: #{tpu_custom_call.1} parent=5 // pred_region
      // Predicated region
      $region21: #{tpu_custom_call.1} parent=19 // pred_check
        %p103 = pneg %p49
      $region22: #{tpu_custom_call.1} parent=19 // pred_check_branch
        %105 = sbr.rel (%p103) target = $region24
      $region23: #{tpu_custom_call.1} parent=19 // pred_region
        %p106 = scmp.lt.s32.totalorder %s8, 1
        %s107 = scalar_select %p106, %s8, 1
        %s108 = smul.addr %s107, 10
        %s109 = smul.addr %s108, 8
        %s110 = scalar_lea.vmem %s1, %s109
      $region24: #{tpu_custom_call.1} parent=19 // pred_fallthru
        _
    $region20: #{tpu_custom_call.1} parent=5 // pred_fallthru
      _
    %p111 = scmp.le.s32.totalorder 1, %s8
    %p112 = scmp.lt.s32.totalorder %s8, 3
    %p113 = pnand %p111, %p112
    %p114 = pneg %p113
    // Predicated region
    $region25: #{tpu_custom_call.1} parent=5 // pred_check
      _
    $region26: #{tpu_custom_call.1} parent=5 // pred_check_branch
      %116 = sbr.rel (%p113) target = $region28
    $region27: #{tpu_custom_call.1} parent=5 // pred_region
      %s117 = ssub.s32 %s8, 1
      %p118 = pneg %p29
      %p119 = pneg %p26
      %p120 = scmp.lt.s32.totalorder %s13, 1
      %s121 = scalar_select %p120, %s13, 1
      %s122 = smul.addr %s121, 10
      %s123 = smul.addr %s122, 8
      %s124 = scalar_lea.vmem %s1, %s123
      %p125 = pneg %p55
      %p126 = pneg %p52
      %p127 = pneg %p81
      %p128 = pneg %p78
      %p129 = scmp.lt.s32.totalorder %s13, 1
      %s130 = scalar_select %p129, %s13, 1
      %s131 = smul.addr %s130, 10
      %s132 = smul.addr %s131, 8
      %s133 = scalar_lea.vmem %s2, %s132
      %p134 = scmp.lt.s32.totalorder %s13, 1
      %s135 = scalar_select %p134, %s13, 1
      %s136 = smul.addr %s135, 10
      %s137 = smul.addr %s136, 8
      %s138 = scalar_lea.vmem %s1, %s137
      %p139 = scmp.lt.s32.totalorder %s13, 1
      %s140 = scalar_select %p139, %s13, 1
      %s141 = smul.addr %s140, 10
      %s142 = smul.addr %s141, 8
      %s143 = scalar_lea.vmem %s2, %s142
      %v144 = vld [vmem:[%s0] sm:$0xff]
      %v145 = vld [vmem:[%s0 + $0x8] sm:$0xff]
      %v146 = vld [vmem:[%s0 + $0x10] sm:$0xff]
      %v147 = vld [vmem:[%s0 + $0x18] sm:$0xff]
      %v148 = vld [vmem:[%s0 + $0x20] sm:$0x1f]
      %v149 = vld [vmem:[%s138] sm:$0xff]
      %v150 = vld [vmem:[%s138 + $0x8] sm:$0xff]
      %v151 = vld [vmem:[%s138 + $0x10] sm:$0xff]
      %v152 = vld [vmem:[%s138 + $0x18] sm:$0xff]
      %v153 = vld [vmem:[%s138 + $0x20] sm:$0xff]
      %v154 = vld [vmem:[%s138 + $0x28] sm:$0xff]
      %v155 = vld [vmem:[%s138 + $0x30] sm:$0xff]
      %v156 = vld [vmem:[%s138 + $0x38] sm:$0xff]
      %v157 = vld [vmem:[%s138 + $0x40] sm:$0x1f]
      %v158 = vld [vmem:[%s138 + $0x48] sm:$0x1f]
      %vm159 = vcmask 302080
      %v161 = vsel %vm159, %v144, 0
      %v164 = vsel %vm159, %v145, 0
      %v167 = vsel %vm159, %v146, 0
      %v170 = vsel %vm159, %v147, 0
      %v173 = vsel %vm159, %v148, 0
      %vm175 = vcmask 1044480
      %v177 = vsel %vm175, %v157, 0
      %v180 = vsel %vm175, %v158, 0
      %182 = vmatpush.msra.mxu0 0.0
      %183 = vmatpush.msra.mxu0 0.0
      %184 = vmatpush.msra.mxu0 0.0
      %185 = vmatpush.msra.mxu0 0.0
      %186 = vmatpush.msra.mxu0 0.0
      %187 = vmatpush.msra.mxu0 0.0
      %188 = vmatpush.msra.mxu0 0.0
      %189 = vmatpush.msra.mxu0 0.0
      %190 = vmatpush.msra.mxu0 0.0
      %191 = vmatpush.msra.mxu0 0.0
      %192 = vmatpush.msra.mxu0 0.0
      %193 = vmatpush.msra.mxu0 %v177
      %194 = vmatpush.msra.mxu0 %v155
      %195 = vmatpush.msra.mxu0 %v153
      %196 = vmatpush.msra.mxu0 %v151
      %197 = vmatpush.msra.mxu0 %v149
      %198 = vmatmul.f32.gmra.mxu0 %v161
      %v199 = vpop.f32.mrf.mxu0
      %v200 = vadd.f32 0.0, %v199
      %201 = vmatmul.f32.gmra.mxu0 %v164
      %v202 = vpop.f32.mrf.mxu0
      %v203 = vadd.f32 0.0, %v202
      %204 = vmatmul.f32.gmra.mxu0 %v167
      %v205 = vpop.f32.mrf.mxu0
      %v206 = vadd.f32 0.0, %v205
      %207 = vmatmul.f32.gmra.mxu0 %v170
      %v208 = vpop.f32.mrf.mxu0
      %v209 = vadd.f32 0.0, %v208
      %210 = vmatmul.f32.gmra.mxu0 %v173
      %v211 = vpop.f32.mrf.mxu0
      %v212 = vadd.f32 0.0, %v211
      %213 = vdwg.mxu0
      %214 = vmatpush.msra.mxu0 0.0
      %215 = vmatpush.msra.mxu0 0.0
      %216 = vmatpush.msra.mxu0 0.0
      %217 = vmatpush.msra.mxu0 0.0
      %218 = vmatpush.msra.mxu0 0.0
      %219 = vmatpush.msra.mxu0 0.0
      %220 = vmatpush.msra.mxu0 0.0
      %221 = vmatpush.msra.mxu0 0.0
      %222 = vmatpush.msra.mxu0 0.0
      %223 = vmatpush.msra.mxu0 0.0
      %224 = vmatpush.msra.mxu0 0.0
      %225 = vmatpush.msra.mxu0 %v180
      %226 = vmatpush.msra.mxu0 %v156
      %227 = vmatpush.msra.mxu0 %v154
      %228 = vmatpush.msra.mxu0 %v152
      %229 = vmatpush.msra.mxu0 %v150
      %230 = vmatmul.f32.gmra.mxu0 %v161
      %v231 = vpop.f32.mrf.mxu0
      %v232 = vadd.f32 0.0, %v231
      %233 = vmatmul.f32.gmra.mxu0 %v164
      %v234 = vpop.f32.mrf.mxu0
      %v235 = vadd.f32 0.0, %v234
      %236 = vmatmul.f32.gmra.mxu0 %v167
      %v237 = vpop.f32.mrf.mxu0
      %v238 = vadd.f32 0.0, %v237
      %239 = vmatmul.f32.gmra.mxu0 %v170
      %v240 = vpop.f32.mrf.mxu0
      %v241 = vadd.f32 0.0, %v240
      %242 = vmatmul.f32.gmra.mxu0 %v173
      %v243 = vpop.f32.mrf.mxu0
      %v244 = vadd.f32 0.0, %v243
      %245 = vdwg.mxu0
      %v246 = vmul.f32 %v200, 0.5
      %v247 = vmul.f32 %v232, 0.5
      %v248 = vmul.f32 %v203, 0.5
      %v249 = vmul.f32 %v235, 0.5
      %v250 = vmul.f32 %v206, 0.5
      %v251 = vmul.f32 %v238, 0.5
      %v252 = vmul.f32 %v209, 0.5
      %v253 = vmul.f32 %v241, 0.5
      %v254 = vmul.f32 %v212, 0.5
      %v255 = vmul.f32 %v244, 0.5
      %v256 = vmul.f32 %v200, 0.70710677
      %v257 = vmul.f32 %v232, 0.70710677
      %v258 = vmul.f32 %v203, 0.70710677
      %v259 = vmul.f32 %v235, 0.70710677
      %v260 = vmul.f32 %v206, 0.70710677
      %v261 = vmul.f32 %v238, 0.70710677
      %v262 = vmul.f32 %v209, 0.70710677
      %v263 = vmul.f32 %v241, 0.70710677
      %v264 = vmul.f32 %v212, 0.70710677
      %v265 = vmul.f32 %v244, 0.70710677
      %v266 = vmul.f32 %v256, %v256
      %v267 = vmin.f32 16.0, %v266
      %v268 = vmul.f32 %v267, 2.1237322e-06
      %v269 = vadd.f32 %v268, 0.00028619796
      %v270 = vmul.f32 %v267, %v269
      %v271 = vadd.f32 %v270, 0.0036580483
      %v272 = vmul.f32 %v267, %v271
      %v273 = vadd.f32 %v272, 0.05243302
      %v274 = vmul.f32 %v267, %v273
      %v275 = vadd.f32 %v274, 0.18741608
      %v276 = vmul.f32 %v267, %v275
      %v277 = vadd.f32 %v276, 1.1283791
      %v278 = vmul.f32 %v256, %v277
      %v279 = vmul.f32 %v267, 3.8918573e-05
      %v280 = vadd.f32 %v279, 0.001143296
      %v281 = vmul.f32 %v267, %v280
      %v282 = vadd.f32 %v281, 0.014752088
      %v283 = vmul.f32 %v267, %v282
      %v284 = vadd.f32 %v283, 0.112945676
      %v285 = vmul.f32 %v267, %v284
      %v286 = vadd.f32 %v285, 0.4994258
      %v287 = vmul.f32 %v267, %v286
      %v288 = vadd.f32 %v287, 1.0
      %v289 = vrcp.pop %v288
      %v290 = vmul.f32 %v288, %v289
      %v291 = vsub.f32 1.0, %v290
      %v292 = vmul.f32 %v289, %v291
      %v293 = vadd.f32 %v289, %v292
      %vm294 = vweird.f32 %v288
      %vm295 = vweird.f32 %v289
      %vm296 = vmor %vm294, %vm295
      %v297 = vsel %vm296, %v289, %v293
      %v298 = vand.u32 2147483647, %v288
      %vm299 = vcmp.eq.f32.partialorder %v298, 8.507059e+37
      %v300 = vand.u32 %v288, 2147483648
      %v301 = vor.u32 1.1754944e-38, %v300
      %v302 = vsel %vm299, %v301, %v297
      %v303 = vmul.f32 %v278, %v302
      %v304 = vmin.f32 %v303, 1.0
      %v305 = vmax.f32 %v304, -1.0
      %v306 = vmul.f32 %v257, %v257
      %v307 = vmin.f32 16.0, %v306
      %v308 = vmul.f32 %v307, 2.1237322e-06
      %v309 = vadd.f32 %v308, 0.00028619796
      %v310 = vmul.f32 %v307, %v309
      %v311 = vadd.f32 %v310, 0.0036580483
      %v312 = vmul.f32 %v307, %v311
      %v313 = vadd.f32 %v312, 0.05243302
      %v314 = vmul.f32 %v307, %v313
      %v315 = vadd.f32 %v314, 0.18741608
      %v316 = vmul.f32 %v307, %v315
      %v317 = vadd.f32 %v316, 1.1283791
      %v318 = vmul.f32 %v257, %v317
      %v319 = vmul.f32 %v307, 3.8918573e-05
      %v320 = vadd.f32 %v319, 0.001143296
      %v321 = vmul.f32 %v307, %v320
      %v322 = vadd.f32 %v321, 0.014752088
      %v323 = vmul.f32 %v307, %v322
      %v324 = vadd.f32 %v323, 0.112945676
      %v325 = vmul.f32 %v307, %v324
      %v326 = vadd.f32 %v325, 0.4994258
      %v327 = vmul.f32 %v307, %v326
      %v328 = vadd.f32 %v327, 1.0
      %v329 = vrcp.pop %v328
      %v330 = vmul.f32 %v328, %v329
      %v331 = vsub.f32 1.0, %v330
      %v332 = vmul.f32 %v329, %v331
      %v333 = vadd.f32 %v329, %v332
      %vm334 = vweird.f32 %v328
      %vm335 = vweird.f32 %v329
      %vm336 = vmor %vm334, %vm335
      %v337 = vsel %vm336, %v329, %v333
      %v338 = vand.u32 2147483647, %v328
      %vm339 = vcmp.eq.f32.partialorder %v338, 8.507059e+37
      %v340 = vand.u32 %v328, 2147483648
      %v341 = vor.u32 1.1754944e-38, %v340
      %v342 = vsel %vm339, %v341, %v337
      %v343 = vmul.f32 %v318, %v342
      %v344 = vmin.f32 %v343, 1.0
      %v345 = vmax.f32 %v344, -1.0
      %v346 = vmul.f32 %v258, %v258
      %v347 = vmin.f32 16.0, %v346
      %v348 = vmul.f32 %v347, 2.1237322e-06
      %v349 = vadd.f32 %v348, 0.00028619796
      %v350 = vmul.f32 %v347, %v349
      %v351 = vadd.f32 %v350, 0.0036580483
      %v352 = vmul.f32 %v347, %v351
      %v353 = vadd.f32 %v352, 0.05243302
      %v354 = vmul.f32 %v347, %v353
      %v355 = vadd.f32 %v354, 0.18741608
      %v356 = vmul.f32 %v347, %v355
      %v357 = vadd.f32 %v356, 1.1283791
      %v358 = vmul.f32 %v258, %v357
      %v359 = vmul.f32 %v347, 3.8918573e-05
      %v360 = vadd.f32 %v359, 0.001143296
      %v361 = vmul.f32 %v347, %v360
      %v362 = vadd.f32 %v361, 0.014752088
      %v363 = vmul.f32 %v347, %v362
      %v364 = vadd.f32 %v363, 0.112945676
      %v365 = vmul.f32 %v347, %v364
      %v366 = vadd.f32 %v365, 0.4994258
      %v367 = vmul.f32 %v347, %v366
      %v368 = vadd.f32 %v367, 1.0
      %v369 = vrcp.pop %v368
      %v370 = vmul.f32 %v368, %v369
      %v371 = vsub.f32 1.0, %v370
      %v372 = vmul.f32 %v369, %v371
      %v373 = vadd.f32 %v369, %v372
      %vm374 = vweird.f32 %v368
      %vm375 = vweird.f32 %v369
      %vm376 = vmor %vm374, %vm375
      %v377 = vsel %vm376, %v369, %v373
      %v378 = vand.u32 2147483647, %v368
      %vm379 = vcmp.eq.f32.partialorder %v378, 8.507059e+37
      %v380 = vand.u32 %v368, 2147483648
      %v381 = vor.u32 1.1754944e-38, %v380
      %v382 = vsel %vm379, %v381, %v377
      %v383 = vmul.f32 %v358, %v382
      %v384 = vmin.f32 %v383, 1.0
      %v385 = vmax.f32 %v384, -1.0
      %v386 = vmul.f32 %v259, %v259
      %v387 = vmin.f32 16.0, %v386
      %v388 = vmul.f32 %v387, 2.1237322e-06
      %v389 = vadd.f32 %v388, 0.00028619796
      %v390 = vmul.f32 %v387, %v389
      %v391 = vadd.f32 %v390, 0.0036580483
      %v392 = vmul.f32 %v387, %v391
      %v393 = vadd.f32 %v392, 0.05243302
      %v394 = vmul.f32 %v387, %v393
      %v395 = vadd.f32 %v394, 0.18741608
      %v396 = vmul.f32 %v387, %v395
      %v397 = vadd.f32 %v396, 1.1283791
      %v398 = vmul.f32 %v259, %v397
      %v399 = vmul.f32 %v387, 3.8918573e-05
      %v400 = vadd.f32 %v399, 0.001143296
      %v401 = vmul.f32 %v387, %v400
      %v402 = vadd.f32 %v401, 0.014752088
      %v403 = vmul.f32 %v387, %v402
      %v404 = vadd.f32 %v403, 0.112945676
      %v405 = vmul.f32 %v387, %v404
      %v406 = vadd.f32 %v405, 0.4994258
      %v407 = vmul.f32 %v387, %v406
      %v408 = vadd.f32 %v407, 1.0
      %v409 = vrcp.pop %v408
      %v410 = vmul.f32 %v408, %v409
      %v411 = vsub.f32 1.0, %v410
      %v412 = vmul.f32 %v409, %v411
      %v413 = vadd.f32 %v409, %v412
      %vm414 = vweird.f32 %v408
      %vm415 = vweird.f32 %v409
      %vm416 = vmor %vm414, %vm415
      %v417 = vsel %vm416, %v409, %v413
      %v418 = vand.u32 2147483647, %v408
      %vm419 = vcmp.eq.f32.partialorder %v418, 8.507059e+37
      %v420 = vand.u32 %v408, 2147483648
      %v421 = vor.u32 1.1754944e-38, %v420
      %v422 = vsel %vm419, %v421, %v417
      %v423 = vmul.f32 %v398, %v422
      %v424 = vmin.f32 %v423, 1.0
      %v425 = vmax.f32 %v424, -1.0
      %v426 = vmul.f32 %v260, %v260
      %v427 = vmin.f32 16.0, %v426
      %v428 = vmul.f32 %v427, 2.1237322e-06
      %v429 = vadd.f32 %v428, 0.00028619796
      %v430 = vmul.f32 %v427, %v429
      %v431 = vadd.f32 %v430, 0.0036580483
      %v432 = vmul.f32 %v427, %v431
      %v433 = vadd.f32 %v432, 0.05243302
      %v434 = vmul.f32 %v427, %v433
      %v435 = vadd.f32 %v434, 0.18741608
      %v436 = vmul.f32 %v427, %v435
      %v437 = vadd.f32 %v436, 1.1283791
      %v438 = vmul.f32 %v260, %v437
      %v439 = vmul.f32 %v427, 3.8918573e-05
      %v440 = vadd.f32 %v439, 0.001143296
      %v441 = vmul.f32 %v427, %v440
      %v442 = vadd.f32 %v441, 0.014752088
      %v443 = vmul.f32 %v427, %v442
      %v444 = vadd.f32 %v443, 0.112945676
      %v445 = vmul.f32 %v427, %v444
      %v446 = vadd.f32 %v445, 0.4994258
      %v447 = vmul.f32 %v427, %v446
      %v448 = vadd.f32 %v447, 1.0
      %v449 = vrcp.pop %v448
      %v450 = vmul.f32 %v448, %v449
      %v451 = vsub.f32 1.0, %v450
      %v452 = vmul.f32 %v449, %v451
      %v453 = vadd.f32 %v449, %v452
      %vm454 = vweird.f32 %v448
      %vm455 = vweird.f32 %v449
      %vm456 = vmor %vm454, %vm455
      %v457 = vsel %vm456, %v449, %v453
      %v458 = vand.u32 2147483647, %v448
      %vm459 = vcmp.eq.f32.partialorder %v458, 8.507059e+37
      %v460 = vand.u32 %v448, 2147483648
      %v461 = vor.u32 1.1754944e-38, %v460
      %v462 = vsel %vm459, %v461, %v457
      %v463 = vmul.f32 %v438, %v462
      %v464 = vmin.f32 %v463, 1.0
      %v465 = vmax.f32 %v464, -1.0
      %v466 = vmul.f32 %v261, %v261
      %v467 = vmin.f32 16.0, %v466
      %v468 = vmul.f32 %v467, 2.1237322e-06
      %v469 = vadd.f32 %v468, 0.00028619796
      %v470 = vmul.f32 %v467, %v469
      %v471 = vadd.f32 %v470, 0.0036580483
      %v472 = vmul.f32 %v467, %v471
      %v473 = vadd.f32 %v472, 0.05243302
      %v474 = vmul.f32 %v467, %v473
      %v475 = vadd.f32 %v474, 0.18741608
      %v476 = vmul.f32 %v467, %v475
      %v477 = vadd.f32 %v476, 1.1283791
      %v478 = vmul.f32 %v261, %v477
      %v479 = vmul.f32 %v467, 3.8918573e-05
      %v480 = vadd.f32 %v479, 0.001143296
      %v481 = vmul.f32 %v467, %v480
      %v482 = vadd.f32 %v481, 0.014752088
      %v483 = vmul.f32 %v467, %v482
      %v484 = vadd.f32 %v483, 0.112945676
      %v485 = vmul.f32 %v467, %v484
      %v486 = vadd.f32 %v485, 0.4994258
      %v487 = vmul.f32 %v467, %v486
      %v488 = vadd.f32 %v487, 1.0
      %v489 = vrcp.pop %v488
      %v490 = vmul.f32 %v488, %v489
      %v491 = vsub.f32 1.0, %v490
      %v492 = vmul.f32 %v489, %v491
      %v493 = vadd.f32 %v489, %v492
      %vm494 = vweird.f32 %v488
      %vm495 = vweird.f32 %v489
      %vm496 = vmor %vm494, %vm495
      %v497 = vsel %vm496, %v489, %v493
      %v498 = vand.u32 2147483647, %v488
      %vm499 = vcmp.eq.f32.partialorder %v498, 8.507059e+37
      %v500 = vand.u32 %v488, 2147483648
      %v501 = vor.u32 1.1754944e-38, %v500
      %v502 = vsel %vm499, %v501, %v497
      %v503 = vmul.f32 %v478, %v502
      %v504 = vmin.f32 %v503, 1.0
      %v505 = vmax.f32 %v504, -1.0
      %v506 = vmul.f32 %v262, %v262
      %v507 = vmin.f32 16.0, %v506
      %v508 = vmul.f32 %v507, 2.1237322e-06
      %v509 = vadd.f32 %v508, 0.00028619796
      %v510 = vmul.f32 %v507, %v509
      %v511 = vadd.f32 %v510, 0.0036580483
      %v512 = vmul.f32 %v507, %v511
      %v513 = vadd.f32 %v512, 0.05243302
      %v514 = vmul.f32 %v507, %v513
      %v515 = vadd.f32 %v514, 0.18741608
      %v516 = vmul.f32 %v507, %v515
      %v517 = vadd.f32 %v516, 1.1283791
      %v518 = vmul.f32 %v262, %v517
      %v519 = vmul.f32 %v507, 3.8918573e-05
      %v520 = vadd.f32 %v519, 0.001143296
      %v521 = vmul.f32 %v507, %v520
      %v522 = vadd.f32 %v521, 0.014752088
      %v523 = vmul.f32 %v507, %v522
      %v524 = vadd.f32 %v523, 0.112945676
      %v525 = vmul.f32 %v507, %v524
      %v526 = vadd.f32 %v525, 0.4994258
      %v527 = vmul.f32 %v507, %v526
      %v528 = vadd.f32 %v527, 1.0
      %v529 = vrcp.pop %v528
      %v530 = vmul.f32 %v528, %v529
      %v531 = vsub.f32 1.0, %v530
      %v532 = vmul.f32 %v529, %v531
      %v533 = vadd.f32 %v529, %v532
      %vm534 = vweird.f32 %v528
      %vm535 = vweird.f32 %v529
      %vm536 = vmor %vm534, %vm535
      %v537 = vsel %vm536, %v529, %v533
      %v538 = vand.u32 2147483647, %v528
      %vm539 = vcmp.eq.f32.partialorder %v538, 8.507059e+37
      %v540 = vand.u32 %v528, 2147483648
      %v541 = vor.u32 1.1754944e-38, %v540
      %v542 = vsel %vm539, %v541, %v537
      %v543 = vmul.f32 %v518, %v542
      %v544 = vmin.f32 %v543, 1.0
      %v545 = vmax.f32 %v544, -1.0
      %v546 = vmul.f32 %v263, %v263
      %v547 = vmin.f32 16.0, %v546
      %v548 = vmul.f32 %v547, 2.1237322e-06
      %v549 = vadd.f32 %v548, 0.00028619796
      %v550 = vmul.f32 %v547, %v549
      %v551 = vadd.f32 %v550, 0.0036580483
      %v552 = vmul.f32 %v547, %v551
      %v553 = vadd.f32 %v552, 0.05243302
      %v554 = vmul.f32 %v547, %v553
      %v555 = vadd.f32 %v554, 0.18741608
      %v556 = vmul.f32 %v547, %v555
      %v557 = vadd.f32 %v556, 1.1283791
      %v558 = vmul.f32 %v263, %v557
      %v559 = vmul.f32 %v547, 3.8918573e-05
      %v560 = vadd.f32 %v559, 0.001143296
      %v561 = vmul.f32 %v547, %v560
      %v562 = vadd.f32 %v561, 0.014752088
      %v563 = vmul.f32 %v547, %v562
      %v564 = vadd.f32 %v563, 0.112945676
      %v565 = vmul.f32 %v547, %v564
      %v566 = vadd.f32 %v565, 0.4994258
      %v567 = vmul.f32 %v547, %v566
      %v568 = vadd.f32 %v567, 1.0
      %v569 = vrcp.pop %v568
      %v570 = vmul.f32 %v568, %v569
      %v571 = vsub.f32 1.0, %v570
      %v572 = vmul.f32 %v569, %v571
      %v573 = vadd.f32 %v569, %v572
      %vm574 = vweird.f32 %v568
      %vm575 = vweird.f32 %v569
      %vm576 = vmor %vm574, %vm575
      %v577 = vsel %vm576, %v569, %v573
      %v578 = vand.u32 2147483647, %v568
      %vm579 = vcmp.eq.f32.partialorder %v578, 8.507059e+37
      %v580 = vand.u32 %v568, 2147483648
      %v581 = vor.u32 1.1754944e-38, %v580
      %v582 = vsel %vm579, %v581, %v577
      %v583 = vmul.f32 %v558, %v582
      %v584 = vmin.f32 %v583, 1.0
      %v585 = vmax.f32 %v584, -1.0
      %v586 = vmul.f32 %v264, %v264
      %v587 = vmin.f32 16.0, %v586
      %v588 = vmul.f32 %v587, 2.1237322e-06
      %v589 = vadd.f32 %v588, 0.00028619796
      %v590 = vmul.f32 %v587, %v589
      %v591 = vadd.f32 %v590, 0.0036580483
      %v592 = vmul.f32 %v587, %v591
      %v593 = vadd.f32 %v592, 0.05243302
      %v594 = vmul.f32 %v587, %v593
      %v595 = vadd.f32 %v594, 0.18741608
      %v596 = vmul.f32 %v587, %v595
      %v597 = vadd.f32 %v596, 1.1283791
      %v598 = vmul.f32 %v264, %v597
      %v599 = vmul.f32 %v587, 3.8918573e-05
      %v600 = vadd.f32 %v599, 0.001143296
      %v601 = vmul.f32 %v587, %v600
      %v602 = vadd.f32 %v601, 0.014752088
      %v603 = vmul.f32 %v587, %v602
      %v604 = vadd.f32 %v603, 0.112945676
      %v605 = vmul.f32 %v587, %v604
      %v606 = vadd.f32 %v605, 0.4994258
      %v607 = vmul.f32 %v587, %v606
      %v608 = vadd.f32 %v607, 1.0
      %v609 = vrcp.pop %v608
      %v610 = vmul.f32 %v608, %v609
      %v611 = vsub.f32 1.0, %v610
      %v612 = vmul.f32 %v609, %v611
      %v613 = vadd.f32 %v609, %v612
      %vm614 = vweird.f32 %v608
      %vm615 = vweird.f32 %v609
      %vm616 = vmor %vm614, %vm615
      %v617 = vsel %vm616, %v609, %v613
      %v618 = vand.u32 2147483647, %v608
      %vm619 = vcmp.eq.f32.partialorder %v618, 8.507059e+37
      %v620 = vand.u32 %v608, 2147483648
      %v621 = vor.u32 1.1754944e-38, %v620
      %v622 = vsel %vm619, %v621, %v617
      %v623 = vmul.f32 %v598, %v622
      %v624 = vmin.f32 %v623, 1.0
      %v625 = vmax.f32 %v624, -1.0
      %v626 = vmul.f32 %v265, %v265
      %v627 = vmin.f32 16.0, %v626
      %v628 = vmul.f32 %v627, 2.1237322e-06
      %v629 = vadd.f32 %v628, 0.00028619796
      %v630 = vmul.f32 %v627, %v629
      %v631 = vadd.f32 %v630, 0.0036580483
      %v632 = vmul.f32 %v627, %v631
      %v633 = vadd.f32 %v632, 0.05243302
      %v634 = vmul.f32 %v627, %v633
      %v635 = vadd.f32 %v634, 0.18741608
      %v636 = vmul.f32 %v627, %v635
      %v637 = vadd.f32 %v636, 1.1283791
      %v638 = vmul.f32 %v265, %v637
      %v639 = vmul.f32 %v627, 3.8918573e-05
      %v640 = vadd.f32 %v639, 0.001143296
      %v641 = vmul.f32 %v627, %v640
      %v642 = vadd.f32 %v641, 0.014752088
      %v643 = vmul.f32 %v627, %v642
      %v644 = vadd.f32 %v643, 0.112945676
      %v645 = vmul.f32 %v627, %v644
      %v646 = vadd.f32 %v645, 0.4994258
      %v647 = vmul.f32 %v627, %v646
      %v648 = vadd.f32 %v647, 1.0
      %v649 = vrcp.pop %v648
      %v650 = vmul.f32 %v648, %v649
      %v651 = vsub.f32 1.0, %v650
      %v652 = vmul.f32 %v649, %v651
      %v653 = vadd.f32 %v649, %v652
      %vm654 = vweird.f32 %v648
      %vm655 = vweird.f32 %v649
      %vm656 = vmor %vm654, %vm655
      %v657 = vsel %vm656, %v649, %v653
      %v658 = vand.u32 2147483647, %v648
      %vm659 = vcmp.eq.f32.partialorder %v658, 8.507059e+37
      %v660 = vand.u32 %v648, 2147483648
      %v661 = vor.u32 1.1754944e-38, %v660
      %v662 = vsel %vm659, %v661, %v657
      %v663 = vmul.f32 %v638, %v662
      %v664 = vmin.f32 %v663, 1.0
      %v665 = vmax.f32 %v664, -1.0
      %v666 = vadd.f32 %v305, 1.0
      %v667 = vadd.f32 %v345, 1.0
      %v668 = vadd.f32 %v385, 1.0
      %v669 = vadd.f32 %v425, 1.0
      %v670 = vadd.f32 %v465, 1.0
      %v671 = vadd.f32 %v505, 1.0
      %v672 = vadd.f32 %v545, 1.0
      %v673 = vadd.f32 %v585, 1.0
      %v674 = vadd.f32 %v625, 1.0
      %v675 = vadd.f32 %v665, 1.0
      %v676 = vmul.f32 %v246, %v666
      %v677 = vmul.f32 %v247, %v667
      %v678 = vmul.f32 %v248, %v668
      %v679 = vmul.f32 %v249, %v669
      %v680 = vmul.f32 %v250, %v670
      %v681 = vmul.f32 %v251, %v671
      %v682 = vmul.f32 %v252, %v672
      %v683 = vmul.f32 %v253, %v673
      %v684 = vmul.f32 %v254, %v674
      %v685 = vmul.f32 %v255, %v675
      %686 = vst [vmem:[%s143] sm:$0xff] %v676
      %687 = vst [vmem:[%s143 + $0x8] sm:$0xff] %v677
      %688 = vst [vmem:[%s143 + $0x10] sm:$0xff] %v678
      %689 = vst [vmem:[%s143 + $0x18] sm:$0xff] %v679
      %690 = vst [vmem:[%s143 + $0x20] sm:$0xff] %v680
      %691 = vst [vmem:[%s143 + $0x28] sm:$0xff] %v681
      %692 = vst [vmem:[%s143 + $0x30] sm:$0xff] %v682
      %693 = vst [vmem:[%s143 + $0x38] sm:$0xff] %v683
      %694 = vst [vmem:[%s143 + $0x40] sm:$0x1f] %v684
      %695 = vst [vmem:[%s143 + $0x48] sm:$0x1f] %v685
      %p696 = scmp.lt.s32.totalorder %s13, 1
      %s697 = scalar_select %p696, %s13, 1
      %s698 = smul.addr %s697, 10
      %s699 = smul.addr %s698, 8
      %s700 = scalar_lea.vmem %s2, %s699
      // Predicated region
      $region29: #{tpu_custom_call.1} parent=27 // pred_check
        %p701 = pneg %p78
      $region30: #{tpu_custom_call.1} parent=27 // pred_check_branch
        %703 = sbr.rel (%p701) target = $region32
      $region31: #{tpu_custom_call.1} parent=27 // pred_region
        _
      $region32: #{tpu_custom_call.1} parent=27 // pred_fallthru
        _
    $region28: #{tpu_custom_call.1} parent=5 // pred_fallthru
      _
    %p704 = scmp.le.s32.totalorder 2, %s8
    // Predicated region
    $region33: #{tpu_custom_call.1} parent=5 // pred_check
      %p705 = pneg %p704
    $region34: #{tpu_custom_call.1} parent=5 // pred_check_branch
      %707 = sbr.rel (%p705) target = $region36
    $region35: #{tpu_custom_call.1} parent=5 // pred_region
      %s708 = ssub.s32 %s8, 2
      // Predicated region
      $region37: #{tpu_custom_call.1} parent=35 // pred_check
        %p709 = pneg %p84
      $region38: #{tpu_custom_call.1} parent=35 // pred_check_branch
        %711 = sbr.rel (%p709) target = $region40
      $region39: #{tpu_custom_call.1} parent=35 // pred_region
        %p712 = scmp.lt.s32.totalorder %s14, 1
        %s713 = scalar_select %p712, %s14, 1
        %s714 = smul.addr %s713, 10
        %s715 = smul.addr %s714, 8
        %s716 = scalar_lea.vmem %s2, %s715
      $region40: #{tpu_custom_call.1} parent=35 // pred_fallthru
        _
    $region36: #{tpu_custom_call.1} parent=5 // pred_fallthru
      _
  $region6: #{tpu_custom_call.1} parent=0 // loop_footer
    %s12 = sadd.s32 1, %s8
  $region7: #{tpu_custom_call.1} parent=0 // loop_footer_branch
    %7 = sbr.rel target = $region3
  $region8: #{tpu_custom_call.1} parent=0 // loop_exit
    _

</llo_original>
